<compile_context>
chip_gen: v6e
topology: v6e:2x2x1
jax: 0.10.0
libtpu: 0.0.40
codegen_flags: <defaults>
</compile_context>

<pallas_src>
import math

import jax
import jax.numpy as jnp
from jax.experimental import pallas as pl
from jax.experimental.pallas import tpu as pltpu

LN_EPS = 1e-5
_INV_SQRT2 = 1.0 / math.sqrt(2.0)


def _gelu_exact(x):
    # PyTorch nn.GELU default (approximate='none'): 0.5*x*(1+erf(x/sqrt(2)))
    return 0.5 * x * (1.0 + jax.lax.erf(x * _INV_SQRT2))


def _gelu_tanh(x):
    # tanh approximation -> transcendental runs on the EUP slot.
    return jax.nn.gelu(x, approximate=True)


def _make_kernel(splits, approx_gelu, matmul_dtype):
    gelu = _gelu_tanh if approx_gelu else _gelu_exact
    if matmul_dtype == jnp.float32:
        cast = lambda a: a
    else:
        cast = lambda a: a.astype(matmul_dtype)

    def kernel(x_ref, w1_ref, b1_ref, w2_ref, b2_ref, w3_ref, b3_ref, o_ref):
        bm = x_ref.shape[0]
        sub = bm // splits
        # Unrolled sub-tiles are mutually independent -> the LLO scheduler can
        # overlap one sub-tile's GELU with the other sub-tile's matmul.
        for s in range(splits):
            r = pl.ds(s * sub, sub)                             # static offset
            x = x_ref[r, :].astype(jnp.float32)                 # (sub, 512)

            # LayerNorm (two-pass, centered variance). gamma/beta have been
            # folded into w1/b1 at parameter-prep time.
            inv_d = 1.0 / x.shape[-1]
            mean = jnp.sum(x, axis=-1, keepdims=True) * inv_d
            xc = x - mean
            var = jnp.sum(xc * xc, axis=-1, keepdims=True) * inv_d
            xn = xc * jax.lax.rsqrt(var + LN_EPS)

            h = jnp.dot(cast(xn), w1_ref[...],
                        preferred_element_type=jnp.float32) + b1_ref[...]
            h = gelu(h)                                          # (sub, 256)
            h = jnp.dot(cast(h), w2_ref[...],
                        preferred_element_type=jnp.float32) + b2_ref[...]
            h = gelu(h)                                          # (sub, 128)
            z = jnp.dot(cast(h), w3_ref[...],
                        preferred_element_type=jnp.float32) + b3_ref[...]
            o_ref[r, :] = z.astype(o_ref.dtype)                  # (sub, 128pad)

    return kernel


def _pick_bm(batch, bm):
    """Batch tile: as large as requested (big tiles amortize the ~0.35us
    per-grid-step overhead and DMA setup).  When actually tiling, keep the
    tile a multiple of 8 for the (8,128) layout constraint.  No forced
    multi-step split (pure overhead on single-TC v5e/v6e)."""
    bm = min(bm, batch)
    if bm < batch and bm % 8:
        bm = ((bm + 7) // 8) * 8
    return bm


def prepare_params(params, *, use_bf16=False):
    """One-time parameter prep (hoisted off the per-call hot path):
      * fold LayerNorm gamma/beta into the first linear layer,
      * lane-pad the final layer to a multiple of 128 output lanes so the
        kernel's output slab gets unmasked vector stores,
      * optionally cast weights to bf16 for the fast MXU path."""
    g = params["ln_gamma"].reshape(-1)           # (512,)
    be = params["ln_beta"].reshape(1, -1)        # (1, 512)
    w1, b1 = params["w1"], params["b1"]
    w2, b2 = params["w2"], params["b2"]
    w3, b3 = params["w3"], params["b3"]

    w1f = g[:, None] * w1                        # diag(gamma) @ w1
    b1f = b1 + be @ w1                           # beta @ w1 + b1

    d_out = w3.shape[1]
    d_pad = ((d_out + 127) // 128) * 128
    w3p = jnp.zeros((w3.shape[0], d_pad), w3.dtype).at[:, :d_out].set(w3)
    b3p = jnp.zeros((1, d_pad), b3.dtype).at[:, :d_out].set(b3)

    wdt = jnp.bfloat16 if use_bf16 else jnp.float32
    return {
        "w1": w1f.astype(wdt), "b1": b1f.astype(jnp.float32),
        "w2": w2.astype(wdt), "b2": b2.astype(jnp.float32),
        "w3": w3p.astype(wdt), "b3": b3p.astype(jnp.float32),
        "d_out": d_out,
    }


def estimator_forward(x, prep, *, bm=1024, approx_gelu=False):
    """Eval-mode forward. x: (B, 512) float32; prep from prepare_params()."""
    B, D_in = x.shape
    w1, b1 = prep["w1"], prep["b1"]
    w2, b2 = prep["w2"], prep["b2"]
    w3, b3 = prep["w3"], prep["b3"]
    d_out = prep["d_out"]
    d_pad = w3.shape[1]

    bm = _pick_bm(B, bm)
    # 2 independent sub-tiles inside the body when the tile is big enough
    # (interleaves GELU with the other sub-tile's matmul).
    splits = 2 if (bm >= 256 and bm % 16 == 0) else 1
    kernel = _make_kernel(splits, approx_gelu, w1.dtype)

    grid = (pl.cdiv(B, bm),)
    full = lambda a: pl.BlockSpec(a.shape, lambda i: (0, 0))  # constant-index

    out = pl.pallas_call(
        kernel,
        out_shape=jax.ShapeDtypeStruct((B, d_pad), x.dtype),
        grid_spec=pltpu.PrefetchScalarGridSpec(
            num_scalar_prefetch=0,
            grid=grid,
            in_specs=[
                pl.BlockSpec((bm, D_in), lambda i: (i, 0)),   # x tile (batch)
                full(w1), full(b1),
                full(w2), full(b2),
                full(w3), full(b3),
            ],
            out_specs=pl.BlockSpec((bm, d_pad), lambda i: (i, 0)),
        ),
        compiler_params=pltpu.CompilerParams(
            dimension_semantics=("parallel",)),
    )(x, w1, b1, w2, b2, w3, b3)
    # TODO(synk): consumers able to take the padded (B, 128) slab directly can
    # skip this extra HBM slice copy.
    return out[:, :d_out]


def init_params(key, dims=(512, 256, 128, 48)):
    """Deterministic init. Linear weights stored transposed: (in, out).
    gamma/beta made non-trivial so the LN-affine folding is exercised."""
    key, kg, kb0 = jax.random.split(key, 3)
    params = {
        "ln_gamma": jax.random.uniform(kg, (1, dims[0]), jnp.float32, 0.5, 1.5),
        "ln_beta": jax.random.normal(kb0, (1, dims[0]), jnp.float32) * 0.1,
    }
    for idx in range(len(dims) - 1):
        fan_in, fan_out = dims[idx], dims[idx + 1]
        key, kw, kb = jax.random.split(key, 3)
        bound = 1.0 / math.sqrt(fan_in)
        # PyTorch nn.Linear default: U(-1/sqrt(fan_in), 1/sqrt(fan_in))
        params[f"w{idx + 1}"] = jax.random.uniform(
            kw, (fan_in, fan_out), jnp.float32, -bound, bound)
        params[f"b{idx + 1}"] = jax.random.uniform(
            kb, (1, fan_out), jnp.float32, -bound, bound)
    return params


def reference_forward(x, params):
    """Pure-JAX reference (eval mode, exact-erf GELU) for correctness."""
    mean = jnp.mean(x, axis=-1, keepdims=True)
    var = jnp.mean((x - mean) ** 2, axis=-1, keepdims=True)
    h = (x - mean) / jnp.sqrt(var + LN_EPS)
    h = h * params["ln_gamma"] + params["ln_beta"]
    h = _gelu_exact(h @ params["w1"] + params["b1"])
    h = _gelu_exact(h @ params["w2"] + params["b2"])
    return h @ params["w3"] + params["b3"]


if __name__ == "__main__":
    key = jax.random.PRNGKey(0)
    k_x, k_x2, k_x3, k_p = jax.random.split(key, 4)

    dims = (512, 256, 128, 48)  # resnet18 feature dim -> [256,128] -> out
    params = init_params(k_p, dims)
    prep = prepare_params(params)                    # exact / f32 parity path
    prep_fast = prepare_params(params, use_bf16=True)

    # Small single-tile batch (full-extent block path).
    B = 8
    x = jax.random.normal(k_x, (B, dims[0]), jnp.float32)
    out = jax.block_until_ready(estimator_forward(x, prep))
    ref = reference_forward(x, params)
    assert out.shape == (B, dims[-1]), out.shape
    assert jnp.allclose(out, ref, atol=1e-4, rtol=1e-4), (
        float(jnp.max(jnp.abs(out - ref))))

    # Multi-step grid + partial last tile + 2-sub-tile body path.
    B2 = 520
    x2 = jax.random.normal(k_x2, (B2, dims[0]), jnp.float32)
    out2 = jax.block_until_ready(estimator_forward(x2, prep, bm=256))
    ref2 = reference_forward(x2, params)
    assert out2.shape == (B2, dims[-1]), out2.shape
    assert jnp.allclose(out2, ref2, atol=1e-4, rtol=1e-4), (
        float(jnp.max(jnp.abs(out2 - ref2))))

    # Opt-in fast path: tanh GELU (EUP) + bf16 MXU inputs. Loose sanity check
    # against the exact-erf f32 reference.
    B3 = 64
    x3 = jax.random.normal(k_x3, (B3, dims[0]), jnp.float32)
    out3 = jax.block_until_ready(
        estimator_forward(x3, prep_fast, approx_gelu=True))
    ref3 = reference_forward(x3, params)
    assert out3.shape == (B3, dims[-1]), out3.shape
    assert float(jnp.max(jnp.abs(out3 - ref3))) < 0.1, (
        float(jnp.max(jnp.abs(out3 - ref3))))

    print("KERNEL_OK")
</pallas_src>

<mosaic_0001>
module attributes {stable_mosaic.version = 11 : i64} {
  func.func @kernel(%arg0: i32, %arg1: memref<8x512xf32, #tpu.memory_space<vmem>>, %arg2: memref<512x256xf32, #tpu.memory_space<vmem>>, %arg3: memref<1x256xf32, #tpu.memory_space<vmem>>, %arg4: memref<256x128xf32, #tpu.memory_space<vmem>>, %arg5: memref<1x128xf32, #tpu.memory_space<vmem>>, %arg6: memref<128x128xf32, #tpu.memory_space<vmem>>, %arg7: memref<1x128xf32, #tpu.memory_space<vmem>>, %arg8: memref<8x128xf32, #tpu.memory_space<vmem>>) attributes {dimension_semantics = [#tpu.dimension_semantics<parallel>], iteration_bounds = array<i64: 1>, scalar_prefetch = 0 : i64, scratch_operands = 0 : i64, tpu.core_type = #tpu.core_type<tc>, window_params = [{transform_indices = @transform_0, window_bounds = array<i64: 8, 512>}, {pipeline_mode = #tpu.pipeline_mode<synchronous>, transform_indices = @transform_1, window_bounds = array<i64: 512, 256>}, {pipeline_mode = #tpu.pipeline_mode<synchronous>, transform_indices = @transform_2, window_bounds = array<i64: 1, 256>}, {pipeline_mode = #tpu.pipeline_mode<synchronous>, transform_indices = @transform_3, window_bounds = array<i64: 256, 128>}, {pipeline_mode = #tpu.pipeline_mode<synchronous>, transform_indices = @transform_4, window_bounds = array<i64: 1, 128>}, {pipeline_mode = #tpu.pipeline_mode<synchronous>, transform_indices = @transform_5, window_bounds = array<i64: 128, 128>}, {pipeline_mode = #tpu.pipeline_mode<synchronous>, transform_indices = @transform_6, window_bounds = array<i64: 1, 128>}, {transform_indices = @transform_7, window_bounds = array<i64: 8, 128>}]} {
    %c0 = arith.constant 0 : index
    %c0_0 = arith.constant 0 : index
    %0 = vector.load %arg1[%c0, %c0_0] : memref<8x512xf32, #tpu.memory_space<vmem>>, vector<8x512xf32>
    %cst = arith.constant dense<0.000000e+00> : vector<8xf32>
    %1 = vector.multi_reduction <add>, %0, %cst [1] : vector<8x512xf32> to vector<8xf32>
    %2 = vector.shape_cast %1 : vector<8xf32> to vector<8x1xf32>
    %cst_1 = arith.constant 0.001953125 : f32
    %3 = vector.broadcast %cst_1 : f32 to vector<8x1xf32>
    %4 = arith.mulf %2, %3 : vector<8x1xf32>
    %5 = vector.broadcast %4 : vector<8x1xf32> to vector<8x512xf32>
    %6 = arith.subf %0, %5 : vector<8x512xf32>
    %7 = arith.mulf %6, %6 : vector<8x512xf32>
    %cst_2 = arith.constant dense<0.000000e+00> : vector<8xf32>
    %8 = vector.multi_reduction <add>, %7, %cst_2 [1] : vector<8x512xf32> to vector<8xf32>
    %9 = vector.shape_cast %8 : vector<8xf32> to vector<8x1xf32>
    %cst_3 = arith.constant 0.001953125 : f32
    %10 = vector.broadcast %cst_3 : f32 to vector<8x1xf32>
    %11 = arith.mulf %9, %10 : vector<8x1xf32>
    %cst_4 = arith.constant 9.99999974E-6 : f32
    %12 = vector.broadcast %cst_4 : f32 to vector<8x1xf32>
    %13 = arith.addf %11, %12 : vector<8x1xf32>
    %14 = math.rsqrt %13 : vector<8x1xf32>
    %15 = vector.broadcast %14 : vector<8x1xf32> to vector<8x512xf32>
    %16 = arith.mulf %6, %15 : vector<8x512xf32>
    %c0_5 = arith.constant 0 : index
    %c0_6 = arith.constant 0 : index
    %17 = vector.load %arg2[%c0_5, %c0_6] : memref<512x256xf32, #tpu.memory_space<vmem>>, vector<512x256xf32>
    %cst_7 = arith.constant dense<0.000000e+00> : vector<8x256xf32>
    %18 = tpu.matmul %16, %17, %cst_7 {dimension_numbers = #tpu.dot_dimension_numbers<[1], [0], [0], [1], [0, 0, 1, 1], [], []>} : vector<8x512xf32>, vector<512x256xf32>, vector<8x256xf32> -> vector<8x256xf32>
    %c0_8 = arith.constant 0 : index
    %c0_9 = arith.constant 0 : index
    %19 = vector.load %arg3[%c0_8, %c0_9] : memref<1x256xf32, #tpu.memory_space<vmem>>, vector<1x256xf32>
    %20 = vector.broadcast %19 : vector<1x256xf32> to vector<8x256xf32>
    %21 = arith.addf %18, %20 : vector<8x256xf32>
    %cst_10 = arith.constant 5.000000e-01 : f32
    %22 = vector.broadcast %cst_10 : f32 to vector<8x256xf32>
    %23 = arith.mulf %22, %21 : vector<8x256xf32>
    %cst_11 = arith.constant 0.707106769 : f32
    %24 = vector.broadcast %cst_11 : f32 to vector<8x256xf32>
    %25 = arith.mulf %21, %24 : vector<8x256xf32>
    %26 = math.erf %25 : vector<8x256xf32>
    %cst_12 = arith.constant 1.000000e+00 : f32
    %27 = vector.broadcast %cst_12 : f32 to vector<8x256xf32>
    %28 = arith.addf %27, %26 : vector<8x256xf32>
    %29 = arith.mulf %23, %28 : vector<8x256xf32>
    %c0_13 = arith.constant 0 : index
    %c0_14 = arith.constant 0 : index
    %30 = vector.load %arg4[%c0_13, %c0_14] : memref<256x128xf32, #tpu.memory_space<vmem>>, vector<256x128xf32>
    %cst_15 = arith.constant dense<0.000000e+00> : vector<8x128xf32>
    %31 = tpu.matmul %29, %30, %cst_15 {dimension_numbers = #tpu.dot_dimension_numbers<[1], [0], [0], [1], [0, 0, 1, 1], [], []>} : vector<8x256xf32>, vector<256x128xf32>, vector<8x128xf32> -> vector<8x128xf32>
    %c0_16 = arith.constant 0 : index
    %c0_17 = arith.constant 0 : index
    %32 = vector.load %arg5[%c0_16, %c0_17] : memref<1x128xf32, #tpu.memory_space<vmem>>, vector<1x128xf32>
    %33 = vector.broadcast %32 : vector<1x128xf32> to vector<8x128xf32>
    %34 = arith.addf %31, %33 : vector<8x128xf32>
    %cst_18 = arith.constant 5.000000e-01 : f32
    %35 = vector.broadcast %cst_18 : f32 to vector<8x128xf32>
    %36 = arith.mulf %35, %34 : vector<8x128xf32>
    %cst_19 = arith.constant 0.707106769 : f32
    %37 = vector.broadcast %cst_19 : f32 to vector<8x128xf32>
    %38 = arith.mulf %34, %37 : vector<8x128xf32>
    %39 = math.erf %38 : vector<8x128xf32>
    %cst_20 = arith.constant 1.000000e+00 : f32
    %40 = vector.broadcast %cst_20 : f32 to vector<8x128xf32>
    %41 = arith.addf %40, %39 : vector<8x128xf32>
    %42 = arith.mulf %36, %41 : vector<8x128xf32>
    %c0_21 = arith.constant 0 : index
    %c0_22 = arith.constant 0 : index
    %43 = vector.load %arg6[%c0_21, %c0_22] : memref<128x128xf32, #tpu.memory_space<vmem>>, vector<128x128xf32>
    %cst_23 = arith.constant dense<0.000000e+00> : vector<8x128xf32>
    %44 = tpu.matmul %42, %43, %cst_23 {dimension_numbers = #tpu.dot_dimension_numbers<[1], [0], [0], [1], [0, 0, 1, 1], [], []>} : vector<8x128xf32>, vector<128x128xf32>, vector<8x128xf32> -> vector<8x128xf32>
    %c0_24 = arith.constant 0 : index
    %c0_25 = arith.constant 0 : index
    %45 = vector.load %arg7[%c0_24, %c0_25] : memref<1x128xf32, #tpu.memory_space<vmem>>, vector<1x128xf32>
    %46 = vector.broadcast %45 : vector<1x128xf32> to vector<8x128xf32>
    %47 = arith.addf %44, %46 : vector<8x128xf32>
    %c0_26 = arith.constant 0 : index
    %c0_27 = arith.constant 0 : index
    %48 = vector.load %arg8[%c0_26, %c0_27] : memref<8x128xf32, #tpu.memory_space<vmem>>, vector<8x128xf32>
    tpu.vector_store %arg8[%c0_26, %c0_27], %47 {strides = array<i32>} : memref<8x128xf32, #tpu.memory_space<vmem>>, vector<8x128xf32>,
    return
  }
  func.func @transform_0(%arg0: i32) -> (i32, i32) {
    %c0_i32 = arith.constant 0 : i32
    %c0_i32_0 = arith.constant 0 : i32
    return %arg0, %c0_i32 : i32, i32
  }
  func.func @transform_1(%arg0: i32) -> (i32, i32) {
    %c0_i32 = arith.constant 0 : i32
    %c0_i32_0 = arith.constant 0 : i32
    %c0_i32_1 = arith.constant 0 : i32
    return %c0_i32, %c0_i32_0 : i32, i32
  }
  func.func @transform_2(%arg0: i32) -> (i32, i32) {
    %c0_i32 = arith.constant 0 : i32
    %c0_i32_0 = arith.constant 0 : i32
    %c0_i32_1 = arith.constant 0 : i32
    return %c0_i32, %c0_i32_0 : i32, i32
  }
  func.func @transform_3(%arg0: i32) -> (i32, i32) {
    %c0_i32 = arith.constant 0 : i32
    %c0_i32_0 = arith.constant 0 : i32
    %c0_i32_1 = arith.constant 0 : i32
    return %c0_i32, %c0_i32_0 : i32, i32
  }
  func.func @transform_4(%arg0: i32) -> (i32, i32) {
    %c0_i32 = arith.constant 0 : i32
    %c0_i32_0 = arith.constant 0 : i32
    %c0_i32_1 = arith.constant 0 : i32
    return %c0_i32, %c0_i32_0 : i32, i32
  }
  func.func @transform_5(%arg0: i32) -> (i32, i32) {
    %c0_i32 = arith.constant 0 : i32
    %c0_i32_0 = arith.constant 0 : i32
    %c0_i32_1 = arith.constant 0 : i32
    return %c0_i32, %c0_i32_0 : i32, i32
  }
  func.func @transform_6(%arg0: i32) -> (i32, i32) {
    %c0_i32 = arith.constant 0 : i32
    %c0_i32_0 = arith.constant 0 : i32
    %c0_i32_1 = arith.constant 0 : i32
    return %c0_i32, %c0_i32_0 : i32, i32
  }
  func.func @transform_7(%arg0: i32) -> (i32, i32) {
    %c0_i32 = arith.constant 0 : i32
    %c0_i32_0 = arith.constant 0 : i32
    return %arg0, %c0_i32 : i32, i32
  }
}

</mosaic_0001>

<llo_original>
// kernel: tpu_custom_call.1
$region0: #{tpu_custom_call.1}
  #allocation0 [shape = 'u32[]', space=smem, size = 0x4, offset = 0x4, fixed_abs, tag = 'smem constant byte address 0x4 - core index']
  #allocation1 [shape = 'u32[144,128]{1,0:T(1,128)}', space=vmem, size = 0x12000, scoped, tag = 'internal scratch']
  %s0 = inlined_call_operand.hbm [shape: f32[8,512], index: 0, kind: input, shape index: {}]
  %s1 = inlined_call_operand.hbm [shape: f32[512,256], index: 1, kind: input, shape index: {}]
  %s2 = inlined_call_operand.vmem [shape: f32[1,256], index: 2, kind: input, shape index: {}]
  %s3 = inlined_call_operand.hbm [shape: f32[256,128], index: 3, kind: input, shape index: {}]
  %s4 = inlined_call_operand.vmem [shape: f32[1,128], index: 4, kind: input, shape index: {}]
  %s5 = inlined_call_operand.hbm [shape: f32[128,128], index: 5, kind: input, shape index: {}]
  %s6 = inlined_call_operand.vmem [shape: f32[1,128], index: 6, kind: input, shape index: {}]
  %s7 = inlined_call_operand.hbm [shape: f32[8,128], index: 7, kind: output, shape index: {}]
  %s8 = sld [smem:[#allocation0]]
  $region54: #{tpu_custom_call.1} parent=0
    _
  %s10 = ssub.s32 1, %s8
  %s11 = scalar_select 0, %s10, %s8
  $region1: #{tpu_custom_call.1} parent=0
    #allocation2 [shape = 'u8[16384]{0}', space=vmem, size = 0x4000, scoped, tag = 'input window, operand 0, single buffered']
    #allocation3 [shape = 's32[1]{0}', space=sflag, size = 0x4, scoped, tag = 'scoped memory for tpu_custom_call.1']
    #allocation4 [shape = 's32[1]{0}', space=sflag, size = 0x4, scoped, tag = 'scoped memory for tpu_custom_call.1']
    #allocation5 [shape = 'u8[524288]{0}', space=vmem, size = 0x80000, scoped, tag = 'input window, operand 1, single buffered']
    #allocation6 [shape = 's32[1]{0}', space=sflag, size = 0x4, scoped, tag = 'scoped memory for tpu_custom_call.1']
    #allocation7 [shape = 'u8[131072]{0}', space=vmem, size = 0x20000, scoped, tag = 'input window, operand 3, single buffered']
    #allocation8 [shape = 'u8[65536]{0}', space=vmem, size = 0x10000, scoped, tag = 'input window, operand 5, single buffered']
    #allocation9 [shape = 's32[1]{0}', space=sflag, size = 0x4, scoped, tag = 'scoped memory for tpu_custom_call.1']
    #allocation10 [shape = 'u8[4096]{0}', space=vmem, size = 0x1000, scoped, tag = 'output window, operand 0, single buffered']
    %12 = vsyncpa [#allocation3], 0
    %13 = vsyncpa [#allocation6], 0
    %14 = vsyncpa [#allocation9], 0
    %15 = vsyncpa [#allocation4], 0
    // Predicated region
    $region2: #{tpu_custom_call.1} parent=1 // pred_check
      _
    $region3: #{tpu_custom_call.1} parent=1 // pred_check_branch
      %17 = sbr.rel (0) target = $region5
    $region4: #{tpu_custom_call.1} parent=1 // pred_region
      %s19 = ssub.s32 512, 512
      %20 = vsyncadd [#allocation3], %s19
      %s22 = sshll.u32 [#allocation2], 4
      %s23 = int_to_ptr.vmem [resolvable:$true] %s22
      %25 = dma.hbm_to_vmem [thread:$0]  %s0, 512, %s23, [#allocation3]
    $region5: #{tpu_custom_call.1} parent=1 // pred_fallthru
      _
    // Predicated region
    $region6: #{tpu_custom_call.1} parent=1 // pred_check
      _
    $region7: #{tpu_custom_call.1} parent=1 // pred_check_branch
      %27 = sbr.rel (0) target = $region9
    $region8: #{tpu_custom_call.1} parent=1 // pred_region
      %s29 = ssub.s32 16384, 16384
      %30 = vsyncadd [#allocation6], %s29
      %s31 = sshll.u32 [#allocation5], 4
      %s32 = int_to_ptr.vmem [resolvable:$true] %s31
      %37 = dma.hbm_to_vmem [thread:$0]  %s1, 16384, %s32, [#allocation6], 256, 256, 16
    $region9: #{tpu_custom_call.1} parent=1 // pred_fallthru
      _
    // Predicated region
    $region10: #{tpu_custom_call.1} parent=1 // pred_check
      _
    $region11: #{tpu_custom_call.1} parent=1 // pred_check_branch
      %39 = sbr.rel (0) target = $region13
    $region12: #{tpu_custom_call.1} parent=1 // pred_region
      _
    $region13: #{tpu_custom_call.1} parent=1 // pred_fallthru
      _
    // Predicated region
    $region14: #{tpu_custom_call.1} parent=1 // pred_check
      _
    $region15: #{tpu_custom_call.1} parent=1 // pred_check_branch
      %41 = sbr.rel (0) target = $region17
    $region16: #{tpu_custom_call.1} parent=1 // pred_region
      %s43 = ssub.s32 4096, 4096
      %44 = vsyncadd [#allocation6], %s43
      %s45 = sshll.u32 [#allocation7], 4
      %s46 = int_to_ptr.vmem [resolvable:$true] %s45
      %51 = dma.hbm_to_vmem [thread:$0]  %s3, 4096, %s46, [#allocation6], 128, 128, 8
    $region17: #{tpu_custom_call.1} parent=1 // pred_fallthru
      _
    // Predicated region
    $region18: #{tpu_custom_call.1} parent=1 // pred_check
      _
    $region19: #{tpu_custom_call.1} parent=1 // pred_check_branch
      %53 = sbr.rel (0) target = $region21
    $region20: #{tpu_custom_call.1} parent=1 // pred_region
      _
    $region21: #{tpu_custom_call.1} parent=1 // pred_fallthru
      _
    // Predicated region
    $region22: #{tpu_custom_call.1} parent=1 // pred_check
      _
    $region23: #{tpu_custom_call.1} parent=1 // pred_check_branch
      %55 = sbr.rel (0) target = $region25
    $region24: #{tpu_custom_call.1} parent=1 // pred_region
      %s57 = ssub.s32 2048, 2048
      %58 = vsyncadd [#allocation9], %s57
      %s59 = sshll.u32 [#allocation8], 4
      %s60 = int_to_ptr.vmem [resolvable:$true] %s59
      %65 = dma.hbm_to_vmem [thread:$0]  %s5, 2048, %s60, [#allocation9], 128, 128, 8
    $region25: #{tpu_custom_call.1} parent=1 // pred_fallthru
      _
    // Predicated region
    $region26: #{tpu_custom_call.1} parent=1 // pred_check
      _
    $region27: #{tpu_custom_call.1} parent=1 // pred_check_branch
      %67 = sbr.rel (0) target = $region29
    $region28: #{tpu_custom_call.1} parent=1 // pred_region
      _
    $region29: #{tpu_custom_call.1} parent=1 // pred_fallthru
      _
    // Predicated region
    $region30: #{tpu_custom_call.1} parent=1 // pred_check
      _
    $region31: #{tpu_custom_call.1} parent=1 // pred_check_branch
      %69 = sbr.rel (0) target = $region33
    $region32: #{tpu_custom_call.1} parent=1 // pred_region
      %70 = dma.done [#allocation3], 512
    $region33: #{tpu_custom_call.1} parent=1 // pred_fallthru
      _
    // Predicated region
    $region34: #{tpu_custom_call.1} parent=1 // pred_check
      _
    $region35: #{tpu_custom_call.1} parent=1 // pred_check_branch
      %72 = sbr.rel (0) target = $region37
    $region36: #{tpu_custom_call.1} parent=1 // pred_region
      %73 = dma.done [#allocation6], 16384
    $region37: #{tpu_custom_call.1} parent=1 // pred_fallthru
      _
    // Predicated region
    $region38: #{tpu_custom_call.1} parent=1 // pred_check
      _
    $region39: #{tpu_custom_call.1} parent=1 // pred_check_branch
      %75 = sbr.rel (0) target = $region41
    $region40: #{tpu_custom_call.1} parent=1 // pred_region
      %76 = dma.done [#allocation6], 4096
    $region41: #{tpu_custom_call.1} parent=1 // pred_fallthru
      _
    // Predicated region
    $region42: #{tpu_custom_call.1} parent=1 // pred_check
      _
    $region43: #{tpu_custom_call.1} parent=1 // pred_check_branch
      %78 = sbr.rel (0) target = $region45
    $region44: #{tpu_custom_call.1} parent=1 // pred_region
      %79 = dma.done [#allocation9], 2048
    $region45: #{tpu_custom_call.1} parent=1 // pred_fallthru
      _
    %v80 = vld [vmem:[#allocation2] sm:$0xff]
    %v81 = vld [vmem:[#allocation2 + $0x8] sm:$0xff]
    %v82 = vld [vmem:[#allocation2 + $0x10] sm:$0xff]
    %v83 = vld [vmem:[#allocation2 + $0x18] sm:$0xff]
    %v84 = vadd.f32 %v80, %v81
    %v85 = vadd.f32 %v84, %v82
    %v86 = vadd.f32 %v85, %v83
    %87 = vadd.xlane.f32.xlu0 %v86
    %v88 = vpop.xlane.xlu0 %87
    %v89 = vmul.f32 %v88, 0.001953125
    %v90 = vsub.f32 %v80, %v89
    %v91 = vsub.f32 %v81, %v89
    %v92 = vsub.f32 %v82, %v89
    %v93 = vsub.f32 %v83, %v89
    %v94 = vmul.f32 %v90, %v90
    %v95 = vmul.f32 %v91, %v91
    %v96 = vmul.f32 %v92, %v92
    %v97 = vmul.f32 %v93, %v93
    %v98 = vadd.f32 %v94, %v95
    %v99 = vadd.f32 %v98, %v96
    %v100 = vadd.f32 %v99, %v97
    %101 = vadd.xlane.f32.xlu0 %v100
    %v102 = vpop.xlane.xlu0 %101
    %v103 = vmul.f32 %v102, 0.001953125
    %v104 = vadd.f32 %v103, 1e-05
    %v105 = vrsqrt.pop %v104
    %v106 = vmul.f32 %v90, %v105
    %v107 = vmul.f32 %v91, %v105
    %v108 = vmul.f32 %v92, %v105
    %v109 = vmul.f32 %v93, %v105
    %v110 = vld [vmem:[#allocation5] sm:$0xff]
    %v111 = vld [vmem:[#allocation5 + $0x8] sm:$0xff]
    %v112 = vld [vmem:[#allocation5 + $0x10] sm:$0xff]
    %v113 = vld [vmem:[#allocation5 + $0x18] sm:$0xff]
    %v114 = vld [vmem:[#allocation5 + $0x20] sm:$0xff]
    %v115 = vld [vmem:[#allocation5 + $0x28] sm:$0xff]
    %v116 = vld [vmem:[#allocation5 + $0x30] sm:$0xff]
    %v117 = vld [vmem:[#allocation5 + $0x38] sm:$0xff]
    %v118 = vld [vmem:[#allocation5 + $0x40] sm:$0xff]
    %v119 = vld [vmem:[#allocation5 + $0x48] sm:$0xff]
    %v120 = vld [vmem:[#allocation5 + $0x50] sm:$0xff]
    %v121 = vld [vmem:[#allocation5 + $0x58] sm:$0xff]
    %v122 = vld [vmem:[#allocation5 + $0x60] sm:$0xff]
    %v123 = vld [vmem:[#allocation5 + $0x68] sm:$0xff]
    %v124 = vld [vmem:[#allocation5 + $0x70] sm:$0xff]
    %v125 = vld [vmem:[#allocation5 + $0x78] sm:$0xff]
    %v126 = vld [vmem:[#allocation5 + $0x80] sm:$0xff]
    %v127 = vld [vmem:[#allocation5 + $0x88] sm:$0xff]
    %v128 = vld [vmem:[#allocation5 + $0x90] sm:$0xff]
    %v129 = vld [vmem:[#allocation5 + $0x98] sm:$0xff]
    %v130 = vld [vmem:[#allocation5 + $0xa0] sm:$0xff]
    %v131 = vld [vmem:[#allocation5 + $0xa8] sm:$0xff]
    %v132 = vld [vmem:[#allocation5 + $0xb0] sm:$0xff]
    %v133 = vld [vmem:[#allocation5 + $0xb8] sm:$0xff]
    %v134 = vld [vmem:[#allocation5 + $0xc0] sm:$0xff]
    %v135 = vld [vmem:[#allocation5 + $0xc8] sm:$0xff]
    %v136 = vld [vmem:[#allocation5 + $0xd0] sm:$0xff]
    %v137 = vld [vmem:[#allocation5 + $0xd8] sm:$0xff]
    %v138 = vld [vmem:[#allocation5 + $0xe0] sm:$0xff]
    %v139 = vld [vmem:[#allocation5 + $0xe8] sm:$0xff]
    %v140 = vld [vmem:[#allocation5 + $0xf0] sm:$0xff]
    %v141 = vld [vmem:[#allocation5 + $0xf8] sm:$0xff]
    %v142 = vld [vmem:[#allocation5 + $0x100] sm:$0xff]
    %v143 = vld [vmem:[#allocation5 + $0x108] sm:$0xff]
    %v144 = vld [vmem:[#allocation5 + $0x110] sm:$0xff]
    %v145 = vld [vmem:[#allocation5 + $0x118] sm:$0xff]
    %v146 = vld [vmem:[#allocation5 + $0x120] sm:$0xff]
    %v147 = vld [vmem:[#allocation5 + $0x128] sm:$0xff]
    %v148 = vld [vmem:[#allocation5 + $0x130] sm:$0xff]
    %v149 = vld [vmem:[#allocation5 + $0x138] sm:$0xff]
    %v150 = vld [vmem:[#allocation5 + $0x140] sm:$0xff]
    %v151 = vld [vmem:[#allocation5 + $0x148] sm:$0xff]
    %v152 = vld [vmem:[#allocation5 + $0x150] sm:$0xff]
    %v153 = vld [vmem:[#allocation5 + $0x158] sm:$0xff]
    %v154 = vld [vmem:[#allocation5 + $0x160] sm:$0xff]
    %v155 = vld [vmem:[#allocation5 + $0x168] sm:$0xff]
    %v156 = vld [vmem:[#allocation5 + $0x170] sm:$0xff]
    %v157 = vld [vmem:[#allocation5 + $0x178] sm:$0xff]
    %v158 = vld [vmem:[#allocation5 + $0x180] sm:$0xff]
    %v159 = vld [vmem:[#allocation5 + $0x188] sm:$0xff]
    %v160 = vld [vmem:[#allocation5 + $0x190] sm:$0xff]
    %v161 = vld [vmem:[#allocation5 + $0x198] sm:$0xff]
    %v162 = vld [vmem:[#allocation5 + $0x1a0] sm:$0xff]
    %v163 = vld [vmem:[#allocation5 + $0x1a8] sm:$0xff]
    %v164 = vld [vmem:[#allocation5 + $0x1b0] sm:$0xff]
    %v165 = vld [vmem:[#allocation5 + $0x1b8] sm:$0xff]
    %v166 = vld [vmem:[#allocation5 + $0x1c0] sm:$0xff]
    %v167 = vld [vmem:[#allocation5 + $0x1c8] sm:$0xff]
    %v168 = vld [vmem:[#allocation5 + $0x1d0] sm:$0xff]
    %v169 = vld [vmem:[#allocation5 + $0x1d8] sm:$0xff]
    %v170 = vld [vmem:[#allocation5 + $0x1e0] sm:$0xff]
    %v171 = vld [vmem:[#allocation5 + $0x1e8] sm:$0xff]
    %v172 = vld [vmem:[#allocation5 + $0x1f0] sm:$0xff]
    %v173 = vld [vmem:[#allocation5 + $0x1f8] sm:$0xff]
    %v174 = vld [vmem:[#allocation5 + $0x200] sm:$0xff]
    %v175 = vld [vmem:[#allocation5 + $0x208] sm:$0xff]
    %v176 = vld [vmem:[#allocation5 + $0x210] sm:$0xff]
    %v177 = vld [vmem:[#allocation5 + $0x218] sm:$0xff]
    %v178 = vld [vmem:[#allocation5 + $0x220] sm:$0xff]
    %v179 = vld [vmem:[#allocation5 + $0x228] sm:$0xff]
    %v180 = vld [vmem:[#allocation5 + $0x230] sm:$0xff]
    %v181 = vld [vmem:[#allocation5 + $0x238] sm:$0xff]
    %v182 = vld [vmem:[#allocation5 + $0x240] sm:$0xff]
    %v183 = vld [vmem:[#allocation5 + $0x248] sm:$0xff]
    %v184 = vld [vmem:[#allocation5 + $0x250] sm:$0xff]
    %v185 = vld [vmem:[#allocation5 + $0x258] sm:$0xff]
    %v186 = vld [vmem:[#allocation5 + $0x260] sm:$0xff]
    %v187 = vld [vmem:[#allocation5 + $0x268] sm:$0xff]
    %v188 = vld [vmem:[#allocation5 + $0x270] sm:$0xff]
    %v189 = vld [vmem:[#allocation5 + $0x278] sm:$0xff]
    %v190 = vld [vmem:[#allocation5 + $0x280] sm:$0xff]
    %v191 = vld [vmem:[#allocation5 + $0x288] sm:$0xff]
    %v192 = vld [vmem:[#allocation5 + $0x290] sm:$0xff]
    %v193 = vld [vmem:[#allocation5 + $0x298] sm:$0xff]
    %v194 = vld [vmem:[#allocation5 + $0x2a0] sm:$0xff]
    %v195 = vld [vmem:[#allocation5 + $0x2a8] sm:$0xff]
    %v196 = vld [vmem:[#allocation5 + $0x2b0] sm:$0xff]
    %v197 = vld [vmem:[#allocation5 + $0x2b8] sm:$0xff]
    %v198 = vld [vmem:[#allocation5 + $0x2c0] sm:$0xff]
    %v199 = vld [vmem:[#allocation5 + $0x2c8] sm:$0xff]
    %v200 = vld [vmem:[#allocation5 + $0x2d0] sm:$0xff]
    %v201 = vld [vmem:[#allocation5 + $0x2d8] sm:$0xff]
    %v202 = vld [vmem:[#allocation5 + $0x2e0] sm:$0xff]
    %v203 = vld [vmem:[#allocation5 + $0x2e8] sm:$0xff]
    %v204 = vld [vmem:[#allocation5 + $0x2f0] sm:$0xff]
    %v205 = vld [vmem:[#allocation5 + $0x2f8] sm:$0xff]
    %v206 = vld [vmem:[#allocation5 + $0x300] sm:$0xff]
    %v207 = vld [vmem:[#allocation5 + $0x308] sm:$0xff]
    %v208 = vld [vmem:[#allocation5 + $0x310] sm:$0xff]
    %v209 = vld [vmem:[#allocation5 + $0x318] sm:$0xff]
    %v210 = vld [vmem:[#allocation5 + $0x320] sm:$0xff]
    %v211 = vld [vmem:[#allocation5 + $0x328] sm:$0xff]
    %v212 = vld [vmem:[#allocation5 + $0x330] sm:$0xff]
    %v213 = vld [vmem:[#allocation5 + $0x338] sm:$0xff]
    %v214 = vld [vmem:[#allocation5 + $0x340] sm:$0xff]
    %v215 = vld [vmem:[#allocation5 + $0x348] sm:$0xff]
    %v216 = vld [vmem:[#allocation5 + $0x350] sm:$0xff]
    %v217 = vld [vmem:[#allocation5 + $0x358] sm:$0xff]
    %v218 = vld [vmem:[#allocation5 + $0x360] sm:$0xff]
    %v219 = vld [vmem:[#allocation5 + $0x368] sm:$0xff]
    %v220 = vld [vmem:[#allocation5 + $0x370] sm:$0xff]
    %v221 = vld [vmem:[#allocation5 + $0x378] sm:$0xff]
    %v222 = vld [vmem:[#allocation5 + $0x380] sm:$0xff]
    %v223 = vld [vmem:[#allocation5 + $0x388] sm:$0xff]
    %v224 = vld [vmem:[#allocation5 + $0x390] sm:$0xff]
    %v225 = vld [vmem:[#allocation5 + $0x398] sm:$0xff]
    %v226 = vld [vmem:[#allocation5 + $0x3a0] sm:$0xff]
    %v227 = vld [vmem:[#allocation5 + $0x3a8] sm:$0xff]
    %v228 = vld [vmem:[#allocation5 + $0x3b0] sm:$0xff]
    %v229 = vld [vmem:[#allocation5 + $0x3b8] sm:$0xff]
    %v230 = vld [vmem:[#allocation5 + $0x3c0] sm:$0xff]
    %v231 = vld [vmem:[#allocation5 + $0x3c8] sm:$0xff]
    %v232 = vld [vmem:[#allocation5 + $0x3d0] sm:$0xff]
    %v233 = vld [vmem:[#allocation5 + $0x3d8] sm:$0xff]
    %v234 = vld [vmem:[#allocation5 + $0x3e0] sm:$0xff]
    %v235 = vld [vmem:[#allocation5 + $0x3e8] sm:$0xff]
    %v236 = vld [vmem:[#allocation5 + $0x3f0] sm:$0xff]
    %v237 = vld [vmem:[#allocation5 + $0x3f8] sm:$0xff]
    %v238 = vld [vmem:[%s2] sm:$0x3]
    %v240 = vlaneseq
    %v241 = vshrl.u32 %v240, 7
    %v242 = vsub.s32 0, %v241
    %v243 = vrot.slane %v238, %v242
    %v244 = vlaneseq
    %v245 = vshrl.u32 %v244, 7
    %v246 = vsub.s32 1, %v245
    %v247 = vrot.slane %v238, %v246
    %250 = vmatprep.subr.mxu0 %v141
    %251 = vmatpush1.msra.mxu0 %v140
    %252 = vmatprep.subr.mxu0 %v139
    %253 = vmatpush1.msra.mxu0 %v138
    %254 = vmatprep.subr.mxu0 %v137
    %255 = vmatpush1.msra.mxu0 %v136
    %256 = vmatprep.subr.mxu0 %v135
    %257 = vmatpush1.msra.mxu0 %v134
    %258 = vmatprep.subr.mxu0 %v133
    %259 = vmatpush1.msra.mxu0 %v132
    %260 = vmatprep.subr.mxu0 %v131
    %261 = vmatpush1.msra.mxu0 %v130
    %262 = vmatprep.subr.mxu0 %v129
    %263 = vmatpush1.msra.mxu0 %v128
    %264 = vmatprep.subr.mxu0 %v127
    %265 = vmatpush1.msra.mxu0 %v126
    %266 = vmatprep.subr.mxu0 %v125
    %267 = vmatpush1.msra.mxu0 %v124
    %268 = vmatprep.subr.mxu0 %v123
    %269 = vmatpush1.msra.mxu0 %v122
    %270 = vmatprep.subr.mxu0 %v121
    %271 = vmatpush1.msra.mxu0 %v120
    %272 = vmatprep.subr.mxu0 %v119
    %273 = vmatpush1.msra.mxu0 %v118
    %274 = vmatprep.subr.mxu0 %v117
    %275 = vmatpush1.msra.mxu0 %v116
    %276 = vmatprep.subr.mxu0 %v115
    %277 = vmatpush1.msra.mxu0 %v114
    %278 = vmatprep.subr.mxu0 %v113
    %279 = vmatpush1.msra.mxu0 %v112
    %280 = vmatprep.subr.mxu0 %v111
    %281 = vmatpush1.msra.mxu0 %v110
    %282 = vmatprep.subr.mxu0 %v173
    %283 = vmatpush2.msra.mxu0 %v172
    %284 = vmatprep.subr.mxu0 %v171
    %285 = vmatpush2.msra.mxu0 %v170
    %286 = vmatprep.subr.mxu0 %v169
    %287 = vmatpush2.msra.mxu0 %v168
    %288 = vmatprep.subr.mxu0 %v167
    %289 = vmatpush2.msra.mxu0 %v166
    %290 = vmatprep.subr.mxu0 %v165
    %291 = vmatpush2.msra.mxu0 %v164
    %292 = vmatprep.subr.mxu0 %v163
    %293 = vmatpush2.msra.mxu0 %v162
    %294 = vmatprep.subr.mxu0 %v161
    %295 = vmatpush2.msra.mxu0 %v160
    %296 = vmatprep.subr.mxu0 %v159
    %297 = vmatpush2.msra.mxu0 %v158
    %298 = vmatprep.subr.mxu0 %v157
    %299 = vmatpush2.msra.mxu0 %v156
    %300 = vmatprep.subr.mxu0 %v155
    %301 = vmatpush2.msra.mxu0 %v154
    %302 = vmatprep.subr.mxu0 %v153
    %303 = vmatpush2.msra.mxu0 %v152
    %304 = vmatprep.subr.mxu0 %v151
    %305 = vmatpush2.msra.mxu0 %v150
    %306 = vmatprep.subr.mxu0 %v149
    %307 = vmatpush2.msra.mxu0 %v148
    %308 = vmatprep.subr.mxu0 %v147
    %309 = vmatpush2.msra.mxu0 %v146
    %310 = vmatprep.subr.mxu0 %v145
    %311 = vmatpush2.msra.mxu0 %v144
    %312 = vmatprep.subr.mxu0 %v143
    %313 = vmatpush2.msra.mxu0 %v142
    %314 = vmatprep.mubr.f32.mxu0 %v107
    %315 = vmatmul.mubr.f32.gmra.mxu0 %v106
    %v316 = vpop.f32.mrf.mxu0
    %v317 = vadd.f32 %v243, %v316
    %v318 = vpop.f32.mrf.mxu0
    %v319 = vadd.f32 %v247, %v318
    %320 = vdwg.mxu0
    %321 = vmatprep.subr.mxu0 %v205
    %322 = vmatpush1.msra.mxu0 %v204
    %323 = vmatprep.subr.mxu0 %v203
    %324 = vmatpush1.msra.mxu0 %v202
    %325 = vmatprep.subr.mxu0 %v201
    %326 = vmatpush1.msra.mxu0 %v200
    %327 = vmatprep.subr.mxu0 %v199
    %328 = vmatpush1.msra.mxu0 %v198
    %329 = vmatprep.subr.mxu0 %v197
    %330 = vmatpush1.msra.mxu0 %v196
    %331 = vmatprep.subr.mxu0 %v195
    %332 = vmatpush1.msra.mxu0 %v194
    %333 = vmatprep.subr.mxu0 %v193
    %334 = vmatpush1.msra.mxu0 %v192
    %335 = vmatprep.subr.mxu0 %v191
    %336 = vmatpush1.msra.mxu0 %v190
    %337 = vmatprep.subr.mxu0 %v189
    %338 = vmatpush1.msra.mxu0 %v188
    %339 = vmatprep.subr.mxu0 %v187
    %340 = vmatpush1.msra.mxu0 %v186
    %341 = vmatprep.subr.mxu0 %v185
    %342 = vmatpush1.msra.mxu0 %v184
    %343 = vmatprep.subr.mxu0 %v183
    %344 = vmatpush1.msra.mxu0 %v182
    %345 = vmatprep.subr.mxu0 %v181
    %346 = vmatpush1.msra.mxu0 %v180
    %347 = vmatprep.subr.mxu0 %v179
    %348 = vmatpush1.msra.mxu0 %v178
    %349 = vmatprep.subr.mxu0 %v177
    %350 = vmatpush1.msra.mxu0 %v176
    %351 = vmatprep.subr.mxu0 %v175
    %352 = vmatpush1.msra.mxu0 %v174
    %353 = vmatprep.subr.mxu0 %v237
    %354 = vmatpush2.msra.mxu0 %v236
    %355 = vmatprep.subr.mxu0 %v235
    %356 = vmatpush2.msra.mxu0 %v234
    %357 = vmatprep.subr.mxu0 %v233
    %358 = vmatpush2.msra.mxu0 %v232
    %359 = vmatprep.subr.mxu0 %v231
    %360 = vmatpush2.msra.mxu0 %v230
    %361 = vmatprep.subr.mxu0 %v229
    %362 = vmatpush2.msra.mxu0 %v228
    %363 = vmatprep.subr.mxu0 %v227
    %364 = vmatpush2.msra.mxu0 %v226
    %365 = vmatprep.subr.mxu0 %v225
    %366 = vmatpush2.msra.mxu0 %v224
    %367 = vmatprep.subr.mxu0 %v223
    %368 = vmatpush2.msra.mxu0 %v222
    %369 = vmatprep.subr.mxu0 %v221
    %370 = vmatpush2.msra.mxu0 %v220
    %371 = vmatprep.subr.mxu0 %v219
    %372 = vmatpush2.msra.mxu0 %v218
    %373 = vmatprep.subr.mxu0 %v217
    %374 = vmatpush2.msra.mxu0 %v216
    %375 = vmatprep.subr.mxu0 %v215
    %376 = vmatpush2.msra.mxu0 %v214
    %377 = vmatprep.subr.mxu0 %v213
    %378 = vmatpush2.msra.mxu0 %v212
    %379 = vmatprep.subr.mxu0 %v211
    %380 = vmatpush2.msra.mxu0 %v210
    %381 = vmatprep.subr.mxu0 %v209
    %382 = vmatpush2.msra.mxu0 %v208
    %383 = vmatprep.subr.mxu0 %v207
    %384 = vmatpush2.msra.mxu0 %v206
    %385 = vmatprep.mubr.f32.mxu0 %v109
    %386 = vmatmul.mubr.f32.gmra.mxu0 %v108
    %v387 = vpop.f32.mrf.mxu0
    %v388 = vadd.f32 %v317, %v387
    %v389 = vpop.f32.mrf.mxu0
    %v390 = vadd.f32 %v319, %v389
    %391 = vdwg.mxu0
    %v392 = vmul.f32 %v388, 0.5
    %v393 = vmul.f32 %v390, 0.5
    %v394 = vmul.f32 %v388, 0.70710677
    %v395 = vmul.f32 %v390, 0.70710677
    %v396 = verf.f32.pop %v394
    %v397 = verf.f32.pop %v395
    %v398 = vadd.f32 %v396, 1.0
    %v399 = vadd.f32 %v397, 1.0
    %v400 = vmul.f32 %v392, %v398
    %v401 = vmul.f32 %v393, %v399
    %v402 = vld [vmem:[#allocation7] sm:$0xff]
    %v403 = vld [vmem:[#allocation7 + $0x8] sm:$0xff]
    %v404 = vld [vmem:[#allocation7 + $0x10] sm:$0xff]
    %v405 = vld [vmem:[#allocation7 + $0x18] sm:$0xff]
    %v406 = vld [vmem:[#allocation7 + $0x20] sm:$0xff]
    %v407 = vld [vmem:[#allocation7 + $0x28] sm:$0xff]
    %v408 = vld [vmem:[#allocation7 + $0x30] sm:$0xff]
    %v409 = vld [vmem:[#allocation7 + $0x38] sm:$0xff]
    %v410 = vld [vmem:[#allocation7 + $0x40] sm:$0xff]
    %v411 = vld [vmem:[#allocation7 + $0x48] sm:$0xff]
    %v412 = vld [vmem:[#allocation7 + $0x50] sm:$0xff]
    %v413 = vld [vmem:[#allocation7 + $0x58] sm:$0xff]
    %v414 = vld [vmem:[#allocation7 + $0x60] sm:$0xff]
    %v415 = vld [vmem:[#allocation7 + $0x68] sm:$0xff]
    %v416 = vld [vmem:[#allocation7 + $0x70] sm:$0xff]
    %v417 = vld [vmem:[#allocation7 + $0x78] sm:$0xff]
    %v418 = vld [vmem:[#allocation7 + $0x80] sm:$0xff]
    %v419 = vld [vmem:[#allocation7 + $0x88] sm:$0xff]
    %v420 = vld [vmem:[#allocation7 + $0x90] sm:$0xff]
    %v421 = vld [vmem:[#allocation7 + $0x98] sm:$0xff]
    %v422 = vld [vmem:[#allocation7 + $0xa0] sm:$0xff]
    %v423 = vld [vmem:[#allocation7 + $0xa8] sm:$0xff]
    %v424 = vld [vmem:[#allocation7 + $0xb0] sm:$0xff]
    %v425 = vld [vmem:[#allocation7 + $0xb8] sm:$0xff]
    %v426 = vld [vmem:[#allocation7 + $0xc0] sm:$0xff]
    %v427 = vld [vmem:[#allocation7 + $0xc8] sm:$0xff]
    %v428 = vld [vmem:[#allocation7 + $0xd0] sm:$0xff]
    %v429 = vld [vmem:[#allocation7 + $0xd8] sm:$0xff]
    %v430 = vld [vmem:[#allocation7 + $0xe0] sm:$0xff]
    %v431 = vld [vmem:[#allocation7 + $0xe8] sm:$0xff]
    %v432 = vld [vmem:[#allocation7 + $0xf0] sm:$0xff]
    %v433 = vld [vmem:[#allocation7 + $0xf8] sm:$0xff]
    %v434 = vld [vmem:[%s4] sm:$0x1]
    %v436 = vlaneseq
    %v437 = vshrl.u32 %v436, 7
    %v438 = vsub.s32 0, %v437
    %v439 = vrot.slane %v434, %v438
    %441 = vmatprep.subr.mxu0 0.0
    %442 = vmatpush1.msra.mxu0 %v417
    %443 = vmatprep.subr.mxu0 0.0
    %444 = vmatpush1.msra.mxu0 %v416
    %445 = vmatprep.subr.mxu0 0.0
    %446 = vmatpush1.msra.mxu0 %v415
    %447 = vmatprep.subr.mxu0 0.0
    %448 = vmatpush1.msra.mxu0 %v414
    %449 = vmatprep.subr.mxu0 0.0
    %450 = vmatpush1.msra.mxu0 %v413
    %451 = vmatprep.subr.mxu0 0.0
    %452 = vmatpush1.msra.mxu0 %v412
    %453 = vmatprep.subr.mxu0 0.0
    %454 = vmatpush1.msra.mxu0 %v411
    %455 = vmatprep.subr.mxu0 0.0
    %456 = vmatpush1.msra.mxu0 %v410
    %457 = vmatprep.subr.mxu0 0.0
    %458 = vmatpush1.msra.mxu0 %v409
    %459 = vmatprep.subr.mxu0 0.0
    %460 = vmatpush1.msra.mxu0 %v408
    %461 = vmatprep.subr.mxu0 0.0
    %462 = vmatpush1.msra.mxu0 %v407
    %463 = vmatprep.subr.mxu0 0.0
    %464 = vmatpush1.msra.mxu0 %v406
    %465 = vmatprep.subr.mxu0 0.0
    %466 = vmatpush1.msra.mxu0 %v405
    %467 = vmatprep.subr.mxu0 0.0
    %468 = vmatpush1.msra.mxu0 %v404
    %469 = vmatprep.subr.mxu0 0.0
    %470 = vmatpush1.msra.mxu0 %v403
    %471 = vmatprep.subr.mxu0 0.0
    %472 = vmatpush1.msra.mxu0 %v402
    %473 = vmatprep.subr.mxu0 0.0
    %474 = vmatpush2.msra.mxu0 %v433
    %475 = vmatprep.subr.mxu0 0.0
    %476 = vmatpush2.msra.mxu0 %v432
    %477 = vmatprep.subr.mxu0 0.0
    %478 = vmatpush2.msra.mxu0 %v431
    %479 = vmatprep.subr.mxu0 0.0
    %480 = vmatpush2.msra.mxu0 %v430
    %481 = vmatprep.subr.mxu0 0.0
    %482 = vmatpush2.msra.mxu0 %v429
    %483 = vmatprep.subr.mxu0 0.0
    %484 = vmatpush2.msra.mxu0 %v428
    %485 = vmatprep.subr.mxu0 0.0
    %486 = vmatpush2.msra.mxu0 %v427
    %487 = vmatprep.subr.mxu0 0.0
    %488 = vmatpush2.msra.mxu0 %v426
    %489 = vmatprep.subr.mxu0 0.0
    %490 = vmatpush2.msra.mxu0 %v425
    %491 = vmatprep.subr.mxu0 0.0
    %492 = vmatpush2.msra.mxu0 %v424
    %493 = vmatprep.subr.mxu0 0.0
    %494 = vmatpush2.msra.mxu0 %v423
    %495 = vmatprep.subr.mxu0 0.0
    %496 = vmatpush2.msra.mxu0 %v422
    %497 = vmatprep.subr.mxu0 0.0
    %498 = vmatpush2.msra.mxu0 %v421
    %499 = vmatprep.subr.mxu0 0.0
    %500 = vmatpush2.msra.mxu0 %v420
    %501 = vmatprep.subr.mxu0 0.0
    %502 = vmatpush2.msra.mxu0 %v419
    %503 = vmatprep.subr.mxu0 0.0
    %504 = vmatpush2.msra.mxu0 %v418
    %505 = vmatprep.mubr.f32.mxu0 %v401
    %506 = vmatmul.mubr.f32.gmra.mxu0 %v400
    %v507 = vpop.f32.mrf.mxu0
    %v508 = vadd.f32 %v439, %v507
    %v509 = vpop.f32.mrf.mxu0
    %510 = vdwg.mxu0
    %v511 = vmul.f32 %v508, 0.5
    %v512 = vmul.f32 %v508, 0.70710677
    %v513 = verf.f32.pop %v512
    %v514 = vadd.f32 %v513, 1.0
    %v515 = vmul.f32 %v511, %v514
    %v516 = vld [vmem:[#allocation8] sm:$0xff]
    %v517 = vld [vmem:[#allocation8 + $0x8] sm:$0xff]
    %v518 = vld [vmem:[#allocation8 + $0x10] sm:$0xff]
    %v519 = vld [vmem:[#allocation8 + $0x18] sm:$0xff]
    %v520 = vld [vmem:[#allocation8 + $0x20] sm:$0xff]
    %v521 = vld [vmem:[#allocation8 + $0x28] sm:$0xff]
    %v522 = vld [vmem:[#allocation8 + $0x30] sm:$0xff]
    %v523 = vld [vmem:[#allocation8 + $0x38] sm:$0xff]
    %v524 = vld [vmem:[#allocation8 + $0x40] sm:$0xff]
    %v525 = vld [vmem:[#allocation8 + $0x48] sm:$0xff]
    %v526 = vld [vmem:[#allocation8 + $0x50] sm:$0xff]
    %v527 = vld [vmem:[#allocation8 + $0x58] sm:$0xff]
    %v528 = vld [vmem:[#allocation8 + $0x60] sm:$0xff]
    %v529 = vld [vmem:[#allocation8 + $0x68] sm:$0xff]
    %v530 = vld [vmem:[#allocation8 + $0x70] sm:$0xff]
    %v531 = vld [vmem:[#allocation8 + $0x78] sm:$0xff]
    %v532 = vld [vmem:[%s6] sm:$0x1]
    %v534 = vlaneseq
    %v535 = vshrl.u32 %v534, 7
    %v536 = vsub.s32 0, %v535
    %v537 = vrot.slane %v532, %v536
    %539 = vmatprep.subr.mxu0 0.0
    %540 = vmatpush1.msra.mxu0 %v531
    %541 = vmatprep.subr.mxu0 0.0
    %542 = vmatpush1.msra.mxu0 %v530
    %543 = vmatprep.subr.mxu0 0.0
    %544 = vmatpush1.msra.mxu0 %v529
    %545 = vmatprep.subr.mxu0 0.0
    %546 = vmatpush1.msra.mxu0 %v528
    %547 = vmatprep.subr.mxu0 0.0
    %548 = vmatpush1.msra.mxu0 %v527
    %549 = vmatprep.subr.mxu0 0.0
    %550 = vmatpush1.msra.mxu0 %v526
    %551 = vmatprep.subr.mxu0 0.0
    %552 = vmatpush1.msra.mxu0 %v525
    %553 = vmatprep.subr.mxu0 0.0
    %554 = vmatpush1.msra.mxu0 %v524
    %555 = vmatprep.subr.mxu0 0.0
    %556 = vmatpush1.msra.mxu0 %v523
    %557 = vmatprep.subr.mxu0 0.0
    %558 = vmatpush1.msra.mxu0 %v522
    %559 = vmatprep.subr.mxu0 0.0
    %560 = vmatpush1.msra.mxu0 %v521
    %561 = vmatprep.subr.mxu0 0.0
    %562 = vmatpush1.msra.mxu0 %v520
    %563 = vmatprep.subr.mxu0 0.0
    %564 = vmatpush1.msra.mxu0 %v519
    %565 = vmatprep.subr.mxu0 0.0
    %566 = vmatpush1.msra.mxu0 %v518
    %567 = vmatprep.subr.mxu0 0.0
    %568 = vmatpush1.msra.mxu0 %v517
    %569 = vmatprep.subr.mxu0 0.0
    %570 = vmatpush1.msra.mxu0 %v516
    %571 = vmatprep.subr.mxu0 0.0
    %572 = vmatpush2.msra.mxu0 0.0
    %573 = vmatprep.subr.mxu0 0.0
    %574 = vmatpush2.msra.mxu0 0.0
    %575 = vmatprep.subr.mxu0 0.0
    %576 = vmatpush2.msra.mxu0 0.0
    %577 = vmatprep.subr.mxu0 0.0
    %578 = vmatpush2.msra.mxu0 0.0
    %579 = vmatprep.subr.mxu0 0.0
    %580 = vmatpush2.msra.mxu0 0.0
    %581 = vmatprep.subr.mxu0 0.0
    %582 = vmatpush2.msra.mxu0 0.0
    %583 = vmatprep.subr.mxu0 0.0
    %584 = vmatpush2.msra.mxu0 0.0
    %585 = vmatprep.subr.mxu0 0.0
    %586 = vmatpush2.msra.mxu0 0.0
    %587 = vmatprep.subr.mxu0 0.0
    %588 = vmatpush2.msra.mxu0 0.0
    %589 = vmatprep.subr.mxu0 0.0
    %590 = vmatpush2.msra.mxu0 0.0
    %591 = vmatprep.subr.mxu0 0.0
    %592 = vmatpush2.msra.mxu0 0.0
    %593 = vmatprep.subr.mxu0 0.0
    %594 = vmatpush2.msra.mxu0 0.0
    %595 = vmatprep.subr.mxu0 0.0
    %596 = vmatpush2.msra.mxu0 0.0
    %597 = vmatprep.subr.mxu0 0.0
    %598 = vmatpush2.msra.mxu0 0.0
    %599 = vmatprep.subr.mxu0 0.0
    %600 = vmatpush2.msra.mxu0 0.0
    %601 = vmatprep.subr.mxu0 0.0
    %602 = vmatpush2.msra.mxu0 0.0
    %603 = vmatprep.mubr.f32.mxu0 0.0
    %604 = vmatmul.mubr.f32.gmra.mxu0 %v515
    %v605 = vpop.f32.mrf.mxu0
    %v606 = vadd.f32 %v537, %v605
    %v607 = vpop.f32.mrf.mxu0
    %608 = vdwg.mxu0
    %609 = vst [vmem:[#allocation10] sm:$0xff] %v606
    // Predicated region
    $region46: #{tpu_custom_call.1} parent=1 // pred_check
      _
    $region47: #{tpu_custom_call.1} parent=1 // pred_check_branch
      %611 = sbr.rel (0) target = $region49
    $region48: #{tpu_custom_call.1} parent=1 // pred_region
      %s613 = ssub.s32 128, 128
      %614 = vsyncadd [#allocation4], %s613
      %s616 = sshll.u32 [#allocation10], 4
      %s617 = int_to_ptr.vmem [resolvable:$true] %s616
      %619 = dma.vmem_to_hbm [thread:$0]  %s617, 128, %s7, [#allocation4]
    $region49: #{tpu_custom_call.1} parent=1 // pred_fallthru
      _
    // Predicated region
    $region50: #{tpu_custom_call.1} parent=1 // pred_check
      _
    $region51: #{tpu_custom_call.1} parent=1 // pred_check_branch
      %621 = sbr.rel (0) target = $region53
    $region52: #{tpu_custom_call.1} parent=1 // pred_region
      %622 = dma.done [#allocation4], 128
    $region53: #{tpu_custom_call.1} parent=1 // pred_fallthru
      _
    %623 = vsyncpa [#allocation3], 1
    %624 = vsyncpa [#allocation6], 1
    %625 = vsyncpa [#allocation9], 1
    %626 = vsyncpa [#allocation4], 1

</llo_original>
